<compile_context>
chip_gen: v7x
topology: tpu7x:2x2x1
jax: 0.10.0
libtpu: 0.0.40
codegen_flags: <defaults>
</compile_context>

<pallas_src>
import math
import functools

import numpy as np
import jax
import jax.numpy as jnp
from jax import lax
from jax.experimental import pallas as pl
from jax.experimental.pallas import tpu as pltpu

NUM_VERTICES = 4          # M
D = NUM_VERTICES - 1      # 3
DP2 = D + 2               # 5
EPS = 1e-12

_SUB = 8                  # sublanes per inner chunk
_LANE = 128               # lanes
_UNIT = _SUB * _LANE      # spheres per inner chunk (1024)
_TARGET_UNITS = 32        # chunks per grid step (up to 32768 spheres / step)

_N_ROT_PLANES = D * D                     # 9
_N_FB_PLANES = (NUM_VERTICES - 1) * D     # 9 unique filter-bank planes


# ---------------------------------------------------------------------------
# Deterministic parameter construction (mirrors __init__, done in numpy f64).
# ---------------------------------------------------------------------------
def _get_n_simplex_coordinates(n):
    p = np.eye(n, dtype=np.float64)
    a = (1.0 + math.sqrt(n + 1)) / n
    ones = a * np.ones((1, n), dtype=np.float64)
    p = np.concatenate((ones, p), axis=0)
    p = p - p.mean(axis=0, keepdims=True)
    p = p / np.linalg.norm(p, axis=1, keepdims=True)
    return p


def _rotation_from_two_points_np(p, q):
    B, Dd = p.shape

    def reflection(S, u):
        v = np.matmul(u[:, None, :], S)[:, 0, :]
        v = v / (np.linalg.norm(u, axis=1, keepdims=True) ** 2)
        return S - 2.0 * np.matmul(u[:, :, None], v[:, None, :])

    S = reflection(np.tile(np.eye(Dd, dtype=np.float64), (B, 1, 1)), p + q)
    R = reflection(S, q)
    return R


_VERTICES = _get_n_simplex_coordinates(NUM_VERTICES - 1)        # (4, 3)
_ONES_VEC = _VERTICES[0]                                        # (3,)
_ONES_VEC_N = _ONES_VEC / np.linalg.norm(_ONES_VEC)             # normalized

_tetra = [np.eye(D, dtype=np.float64)]
_tetra += [
    _rotation_from_two_points_np(_VERTICES[0:1], _VERTICES[i:i + 1])[0]
    for i in range(1, NUM_VERTICES)
]
_TETRA = np.stack(_tetra)                                       # (4, 3, 3)

# Python-float constants baked into the kernel.
_Q = [float(_ONES_VEC_N[d]) for d in range(D)]
_QSQ = float(sum(v * v for v in _Q))
_G = [2.0 * _Q[d] / _QSQ for d in range(D)]
_TETRA_F = [[[float(_TETRA[m, i, j]) for j in range(D)] for i in range(D)]
            for m in range(NUM_VERTICES)]


# ---------------------------------------------------------------------------
# Pallas kernel
# ---------------------------------------------------------------------------
def _fbank_kernel(s_ref, rot_ref, fb_ref, *, n_chunks):
    # s_ref:   (5, BR, 128)   spheres, component-major, spheres on (sub, lane)
    # rot_ref: (9, BR, 128)   rotations_0 flattened row-major (i*3 + j)
    # fb_ref:  (9, BR, 128)   unique filter-bank planes, (m-1)*3 + i, m=1..3
    def chunk(c, carry):
        r0 = pl.multiple_of(c * _SUB, _SUB)
        rows = pl.ds(r0, _SUB)
        s = [s_ref[d, rows, :] for d in range(DP2)]          # 5 x (8, 128)

        # unembed_points: centers = spheres[:, :3] / (spheres[:, -1] + eps).
        # The approximate reciprocal is safe here: the common scale cancels
        # exactly under the normalization below.
        w = s[D + 1] + EPS
        inv_w = pl.reciprocal(w, approx=True)
        ct = [s[d] * inv_w for d in range(D)]

        # normalize centers: p = c / ||c||   (rsqrt on EUP + 1 Newton step)
        csq = ct[0] * ct[0] + ct[1] * ct[1] + ct[2] * ct[2]
        inv_n = lax.rsqrt(csq)
        inv_n = inv_n * (1.5 - 0.5 * csq * inv_n * inv_n)
        p = [ct[d] * inv_n for d in range(D)]

        # rotation taking p -> q via two reflections:
        #   S1 = I - 2 u u^T / ||u||^2 = I + e u^T,  u = p + q, e = -2u/||u||^2
        #   R  = S1 - 2 q (q^T S1) / ||q||^2
        u = [p[d] + _Q[d] for d in range(D)]
        usq = u[0] * u[0] + u[1] * u[1] + u[2] * u[2]
        r_ap = pl.reciprocal(usq, approx=True)
        inv_usq = r_ap * (2.0 - usq * r_ap)                  # Newton refine
        n2i = -2.0 * inv_usq
        e = [n2i * u[i] for i in range(D)]
        S1 = [[(1.0 if i == j else 0.0) + e[i] * u[j]
               for j in range(D)] for i in range(D)]
        # v = Q^T S1 = Q + (Q.e) u   (exact, since S1 = I + e u^T)
        qe = _Q[0] * e[0] + _Q[1] * e[1] + _Q[2] * e[2]
        v = [_Q[j] + qe * u[j] for j in range(D)]
        R = [[S1[i][j] - _G[i] * v[j] for j in range(D)] for i in range(D)]

        for i in range(D):
            for j in range(D):
                rot_ref[i * D + j, rows, :] = R[i][j]

        # rotated_spheres = isom(R) @ spheres  (rows 3,4 are unchanged)
        rs = [R[i][0] * s[0] + R[i][1] * s[1] + R[i][2] * s[2]
              for i in range(D)]

        # filter banks: fb_m[:3] = R^T @ (T_m @ rotated_spheres[:3]), m=1..3.
        # (m=0 equals the input spheres, components 3,4 pass through — those
        #  11 planes are reassembled in the wrapper, not written here.)
        for m in range(1, NUM_VERTICES):
            T = _TETRA_F[m]
            trs = [T[l][0] * rs[0] + T[l][1] * rs[1] + T[l][2] * rs[2]
                   for l in range(D)]
            for i in range(D):
                fb_ref[(m - 1) * D + i, rows, :] = (
                    R[0][i] * trs[0] + R[1][i] * trs[1] + R[2][i] * trs[2])
        return carry

    lax.fori_loop(0, n_chunks, chunk, 0, unroll=False)


# ---------------------------------------------------------------------------
# Tiling selection (static, per input shape)
# ---------------------------------------------------------------------------
def _choose_tiling(K):
    n_units = -(-K // _UNIT)                  # cdiv(K, 1024)
    if n_units <= 1:
        block_units, grid_len = 1, 1
    else:
        # Even grid length >= 2 so v7x's two TensorCores get balanced work;
        # each step covers up to _TARGET_UNITS chunks (amortizes the ~0.35us
        # per-step overhead) and stays well inside the scoped-VMEM default.
        grid_len = 2 * (-(-n_units // (2 * _TARGET_UNITS)))
        block_units = -(-n_units // grid_len)
    k_pad = grid_len * block_units * _UNIT
    block_rows = block_units * _SUB
    return block_rows, k_pad, grid_len


# ---------------------------------------------------------------------------
# Wrapper
# ---------------------------------------------------------------------------
@jax.jit
def filter_bank_constructor_nd(spheres):
    """spheres: (K, D+2) -> (rotations_0 (K,3,3), filter_banks (4K,5,1))."""
    spheres = spheres.reshape(-1, DP2).astype(jnp.float32)
    K = spheres.shape[0]
    BR, Kpad, grid_len = _choose_tiling(K)
    n_rows = Kpad // _LANE

    s_t = spheres.T                                            # (5, K)
    if Kpad != K:
        # pad with a harmless valid sphere (all ones) so no NaN/Inf in pad lanes
        s_t = jnp.pad(s_t, ((0, 0), (0, Kpad - K)), constant_values=1.0)
    s_blk = s_t.reshape(DP2, n_rows, _LANE)

    kernel = functools.partial(_fbank_kernel, n_chunks=BR // _SUB)

    cost = pl.CostEstimate(
        flops=180 * Kpad,
        transcendentals=3 * Kpad,
        bytes_accessed=(DP2 + _N_ROT_PLANES + _N_FB_PLANES) * Kpad * 4,
    )

    rot_out, fb_out = pl.pallas_call(
        kernel,
        grid=(grid_len,),
        in_specs=[pl.BlockSpec((DP2, BR, _LANE), lambda i: (0, i, 0))],
        out_specs=[
            pl.BlockSpec((_N_ROT_PLANES, BR, _LANE), lambda i: (0, i, 0)),
            pl.BlockSpec((_N_FB_PLANES, BR, _LANE), lambda i: (0, i, 0)),
        ],
        out_shape=(
            jax.ShapeDtypeStruct((_N_ROT_PLANES, n_rows, _LANE), jnp.float32),
            jax.ShapeDtypeStruct((_N_FB_PLANES, n_rows, _LANE), jnp.float32),
        ),
        compiler_params=pltpu.CompilerParams(dimension_semantics=("parallel",)),
        cost_estimate=cost,
    )(s_blk)

    # ---- reassemble PyTorch-layout outputs (the only transposes left) ----
    rot_flat = rot_out.reshape(_N_ROT_PLANES, Kpad)[:, :K]     # (9, K)
    rotations_0 = rot_flat.reshape(D, D, K).transpose(2, 0, 1)  # (K,3,3)

    fb_flat = fb_out.reshape(_N_FB_PLANES, Kpad)[:, :K]         # (9, K)
    fb_m = fb_flat.reshape(NUM_VERTICES - 1, D, K).transpose(2, 0, 1)  # (K,3,3)
    tail = jnp.broadcast_to(spheres[:, None, D:DP2],
                            (K, NUM_VERTICES - 1, 2))           # (K,3,2)
    block_m = jnp.concatenate([fb_m, tail], axis=2)             # (K,3,5)
    fb_full = jnp.concatenate([spheres[:, None, :], block_m], axis=1)  # (K,4,5)
    filter_banks = fb_full.reshape(NUM_VERTICES * K, DP2)[:, :, None]  # (4K,5,1)
    return rotations_0, filter_banks


# ---------------------------------------------------------------------------
# Pure-numpy reference (float64), mirrors the PyTorch forward.
# ---------------------------------------------------------------------------
def _reference_np(spheres_np):
    s = spheres_np.astype(np.float64).reshape(-1, DP2)
    K = s.shape[0]
    centers = s[:, :D] / (s[:, -1:] + EPS)
    cn = centers / np.linalg.norm(centers, axis=1, keepdims=True)
    q = np.tile(_ONES_VEC_N[None, :], (K, 1))
    R0 = _rotation_from_two_points_np(cn, q)
    isom = np.tile(np.eye(DP2), (K, 1, 1))
    isom[:, :D, :D] = R0
    rs = np.einsum('kij,kj->ki', isom, s)
    fb = np.zeros((K, NUM_VERTICES, DP2))
    for m in range(NUM_VERTICES):
        B = np.einsum('kli,lj->kij', R0, _TETRA[m])        # R0^T @ T_m
        Bi = np.tile(np.eye(DP2), (K, 1, 1))
        Bi[:, :D, :D] = B
        fb[:, m, :] = np.einsum('kij,kj->ki', Bi, rs)
    return R0, fb.reshape(NUM_VERTICES * K, DP2, 1)


if __name__ == "__main__":
    key = jax.random.PRNGKey(0)
    K = 8
    spheres = jax.random.normal(key, (K, DP2), dtype=jnp.float32)

    rotations_0, filter_banks = filter_bank_constructor_nd(spheres)
    jax.block_until_ready((rotations_0, filter_banks))

    assert rotations_0.shape == (K, D, D)
    assert filter_banks.shape == (NUM_VERTICES * K, DP2, 1)

    ref_rot, ref_fb = _reference_np(np.asarray(spheres))
    np.testing.assert_allclose(np.asarray(rotations_0), ref_rot, rtol=1e-3, atol=1e-3)
    np.testing.assert_allclose(np.asarray(filter_banks), ref_fb, rtol=1e-3, atol=1e-3)

    print("KERNEL_OK")
</pallas_src>

<mosaic_0001>
module attributes {stable_mosaic.version = 11 : i64} {
  func.func @_fbank_kernel(%arg0: i32, %arg1: memref<5x8x128xf32, #tpu.memory_space<vmem>>, %arg2: memref<9x8x128xf32, #tpu.memory_space<vmem>>, %arg3: memref<9x8x128xf32, #tpu.memory_space<vmem>>) attributes {dimension_semantics = [#tpu.dimension_semantics<parallel>], iteration_bounds = array<i64: 1>, scalar_prefetch = 0 : i64, scratch_operands = 0 : i64, tpu.core_type = #tpu.core_type<tc>, window_params = [{transform_indices = @transform_0, window_bounds = array<i64: 5, 8, 128>}, {transform_indices = @transform_1, window_bounds = array<i64: 9, 8, 128>}, {transform_indices = @transform_2, window_bounds = array<i64: 9, 8, 128>}]} {
    %c0_i32 = arith.constant 0 : i32
    %c8_i32 = arith.constant 8 : i32
    %0 = arith.muli %c0_i32, %c8_i32 : i32
    %1 = tpu.assume_multiple %0, 8 : i32
    %c0 = arith.constant 0 : index
    %2 = arith.index_cast %1 : i32 to index
    %c0_0 = arith.constant 0 : index
    %3 = vector.load %arg1[%c0, %2, %c0_0] : memref<5x8x128xf32, #tpu.memory_space<vmem>>, vector<1x8x128xf32>
    %4 = vector.shape_cast %3 : vector<1x8x128xf32> to vector<8x128xf32>
    %c1 = arith.constant 1 : index
    %5 = arith.index_cast %1 : i32 to index
    %c0_1 = arith.constant 0 : index
    %6 = vector.load %arg1[%c1, %5, %c0_1] : memref<5x8x128xf32, #tpu.memory_space<vmem>>, vector<1x8x128xf32>
    %7 = vector.shape_cast %6 : vector<1x8x128xf32> to vector<8x128xf32>
    %c2 = arith.constant 2 : index
    %8 = arith.index_cast %1 : i32 to index
    %c0_2 = arith.constant 0 : index
    %9 = vector.load %arg1[%c2, %8, %c0_2] : memref<5x8x128xf32, #tpu.memory_space<vmem>>, vector<1x8x128xf32>
    %10 = vector.shape_cast %9 : vector<1x8x128xf32> to vector<8x128xf32>
    %c4 = arith.constant 4 : index
    %11 = arith.index_cast %1 : i32 to index
    %c0_3 = arith.constant 0 : index
    %12 = vector.load %arg1[%c4, %11, %c0_3] : memref<5x8x128xf32, #tpu.memory_space<vmem>>, vector<1x8x128xf32>
    %13 = vector.shape_cast %12 : vector<1x8x128xf32> to vector<8x128xf32>
    %cst = arith.constant 9.99999996E-13 : f32
    %14 = vector.broadcast %cst : f32 to vector<8x128xf32>
    %15 = arith.addf %13, %14 : vector<8x128xf32>
    %16 = tpu.reciprocal %15 {approx = true} : vector<8x128xf32> -> vector<8x128xf32>
    %17 = arith.mulf %4, %16 : vector<8x128xf32>
    %18 = arith.mulf %7, %16 : vector<8x128xf32>
    %19 = arith.mulf %10, %16 : vector<8x128xf32>
    %20 = arith.mulf %17, %17 : vector<8x128xf32>
    %21 = arith.mulf %18, %18 : vector<8x128xf32>
    %22 = arith.addf %20, %21 : vector<8x128xf32>
    %23 = arith.mulf %19, %19 : vector<8x128xf32>
    %24 = arith.addf %22, %23 : vector<8x128xf32>
    %25 = math.rsqrt %24 : vector<8x128xf32>
    %cst_4 = arith.constant 5.000000e-01 : f32
    %26 = vector.broadcast %cst_4 : f32 to vector<8x128xf32>
    %27 = arith.mulf %26, %24 : vector<8x128xf32>
    %28 = arith.mulf %27, %25 : vector<8x128xf32>
    %29 = arith.mulf %28, %25 : vector<8x128xf32>
    %cst_5 = arith.constant 1.500000e+00 : f32
    %30 = vector.broadcast %cst_5 : f32 to vector<8x128xf32>
    %31 = arith.subf %30, %29 : vector<8x128xf32>
    %32 = arith.mulf %25, %31 : vector<8x128xf32>
    %33 = arith.mulf %17, %32 : vector<8x128xf32>
    %34 = arith.mulf %18, %32 : vector<8x128xf32>
    %35 = arith.mulf %19, %32 : vector<8x128xf32>
    %cst_6 = arith.constant 0.577350259 : f32
    %36 = vector.broadcast %cst_6 : f32 to vector<8x128xf32>
    %37 = arith.addf %33, %36 : vector<8x128xf32>
    %cst_7 = arith.constant 0.577350259 : f32
    %38 = vector.broadcast %cst_7 : f32 to vector<8x128xf32>
    %39 = arith.addf %34, %38 : vector<8x128xf32>
    %cst_8 = arith.constant 0.577350259 : f32
    %40 = vector.broadcast %cst_8 : f32 to vector<8x128xf32>
    %41 = arith.addf %35, %40 : vector<8x128xf32>
    %42 = arith.mulf %37, %37 : vector<8x128xf32>
    %43 = arith.mulf %39, %39 : vector<8x128xf32>
    %44 = arith.addf %42, %43 : vector<8x128xf32>
    %45 = arith.mulf %41, %41 : vector<8x128xf32>
    %46 = arith.addf %44, %45 : vector<8x128xf32>
    %47 = tpu.reciprocal %46 {approx = true} : vector<8x128xf32> -> vector<8x128xf32>
    %48 = arith.mulf %46, %47 : vector<8x128xf32>
    %cst_9 = arith.constant 2.000000e+00 : f32
    %49 = vector.broadcast %cst_9 : f32 to vector<8x128xf32>
    %50 = arith.subf %49, %48 : vector<8x128xf32>
    %51 = arith.mulf %47, %50 : vector<8x128xf32>
    %cst_10 = arith.constant -2.000000e+00 : f32
    %52 = vector.broadcast %cst_10 : f32 to vector<8x128xf32>
    %53 = arith.mulf %52, %51 : vector<8x128xf32>
    %54 = arith.mulf %53, %37 : vector<8x128xf32>
    %55 = arith.mulf %53, %39 : vector<8x128xf32>
    %56 = arith.mulf %53, %41 : vector<8x128xf32>
    %57 = arith.mulf %54, %37 : vector<8x128xf32>
    %cst_11 = arith.constant 1.000000e+00 : f32
    %58 = vector.broadcast %cst_11 : f32 to vector<8x128xf32>
    %59 = arith.addf %58, %57 : vector<8x128xf32>
    %60 = arith.mulf %54, %39 : vector<8x128xf32>
    %cst_12 = arith.constant 0.000000e+00 : f32
    %61 = vector.broadcast %cst_12 : f32 to vector<8x128xf32>
    %62 = arith.addf %61, %60 : vector<8x128xf32>
    %63 = arith.mulf %54, %41 : vector<8x128xf32>
    %cst_13 = arith.constant 0.000000e+00 : f32
    %64 = vector.broadcast %cst_13 : f32 to vector<8x128xf32>
    %65 = arith.addf %64, %63 : vector<8x128xf32>
    %66 = arith.mulf %55, %37 : vector<8x128xf32>
    %cst_14 = arith.constant 0.000000e+00 : f32
    %67 = vector.broadcast %cst_14 : f32 to vector<8x128xf32>
    %68 = arith.addf %67, %66 : vector<8x128xf32>
    %69 = arith.mulf %55, %39 : vector<8x128xf32>
    %cst_15 = arith.constant 1.000000e+00 : f32
    %70 = vector.broadcast %cst_15 : f32 to vector<8x128xf32>
    %71 = arith.addf %70, %69 : vector<8x128xf32>
    %72 = arith.mulf %55, %41 : vector<8x128xf32>
    %cst_16 = arith.constant 0.000000e+00 : f32
    %73 = vector.broadcast %cst_16 : f32 to vector<8x128xf32>
    %74 = arith.addf %73, %72 : vector<8x128xf32>
    %75 = arith.mulf %56, %37 : vector<8x128xf32>
    %cst_17 = arith.constant 0.000000e+00 : f32
    %76 = vector.broadcast %cst_17 : f32 to vector<8x128xf32>
    %77 = arith.addf %76, %75 : vector<8x128xf32>
    %78 = arith.mulf %56, %39 : vector<8x128xf32>
    %cst_18 = arith.constant 0.000000e+00 : f32
    %79 = vector.broadcast %cst_18 : f32 to vector<8x128xf32>
    %80 = arith.addf %79, %78 : vector<8x128xf32>
    %81 = arith.mulf %56, %41 : vector<8x128xf32>
    %cst_19 = arith.constant 1.000000e+00 : f32
    %82 = vector.broadcast %cst_19 : f32 to vector<8x128xf32>
    %83 = arith.addf %82, %81 : vector<8x128xf32>
    %cst_20 = arith.constant 0.577350259 : f32
    %84 = vector.broadcast %cst_20 : f32 to vector<8x128xf32>
    %85 = arith.mulf %84, %54 : vector<8x128xf32>
    %cst_21 = arith.constant 0.577350259 : f32
    %86 = vector.broadcast %cst_21 : f32 to vector<8x128xf32>
    %87 = arith.mulf %86, %55 : vector<8x128xf32>
    %88 = arith.addf %85, %87 : vector<8x128xf32>
    %cst_22 = arith.constant 0.577350259 : f32
    %89 = vector.broadcast %cst_22 : f32 to vector<8x128xf32>
    %90 = arith.mulf %89, %56 : vector<8x128xf32>
    %91 = arith.addf %88, %90 : vector<8x128xf32>
    %92 = arith.mulf %91, %37 : vector<8x128xf32>
    %cst_23 = arith.constant 0.577350259 : f32
    %93 = vector.broadcast %cst_23 : f32 to vector<8x128xf32>
    %94 = arith.addf %93, %92 : vector<8x128xf32>
    %95 = arith.mulf %91, %39 : vector<8x128xf32>
    %cst_24 = arith.constant 0.577350259 : f32
    %96 = vector.broadcast %cst_24 : f32 to vector<8x128xf32>
    %97 = arith.addf %96, %95 : vector<8x128xf32>
    %98 = arith.mulf %91, %41 : vector<8x128xf32>
    %cst_25 = arith.constant 0.577350259 : f32
    %99 = vector.broadcast %cst_25 : f32 to vector<8x128xf32>
    %100 = arith.addf %99, %98 : vector<8x128xf32>
    %cst_26 = arith.constant 1.15470052 : f32
    %101 = vector.broadcast %cst_26 : f32 to vector<8x128xf32>
    %102 = arith.mulf %101, %94 : vector<8x128xf32>
    %103 = arith.subf %59, %102 : vector<8x128xf32>
    %cst_27 = arith.constant 1.15470052 : f32
    %104 = vector.broadcast %cst_27 : f32 to vector<8x128xf32>
    %105 = arith.mulf %104, %97 : vector<8x128xf32>
    %106 = arith.subf %62, %105 : vector<8x128xf32>
    %cst_28 = arith.constant 1.15470052 : f32
    %107 = vector.broadcast %cst_28 : f32 to vector<8x128xf32>
    %108 = arith.mulf %107, %100 : vector<8x128xf32>
    %109 = arith.subf %65, %108 : vector<8x128xf32>
    %cst_29 = arith.constant 1.15470052 : f32
    %110 = vector.broadcast %cst_29 : f32 to vector<8x128xf32>
    %111 = arith.mulf %110, %94 : vector<8x128xf32>
    %112 = arith.subf %68, %111 : vector<8x128xf32>
    %cst_30 = arith.constant 1.15470052 : f32
    %113 = vector.broadcast %cst_30 : f32 to vector<8x128xf32>
    %114 = arith.mulf %113, %97 : vector<8x128xf32>
    %115 = arith.subf %71, %114 : vector<8x128xf32>
    %cst_31 = arith.constant 1.15470052 : f32
    %116 = vector.broadcast %cst_31 : f32 to vector<8x128xf32>
    %117 = arith.mulf %116, %100 : vector<8x128xf32>
    %118 = arith.subf %74, %117 : vector<8x128xf32>
    %cst_32 = arith.constant 1.15470052 : f32
    %119 = vector.broadcast %cst_32 : f32 to vector<8x128xf32>
    %120 = arith.mulf %119, %94 : vector<8x128xf32>
    %121 = arith.subf %77, %120 : vector<8x128xf32>
    %cst_33 = arith.constant 1.15470052 : f32
    %122 = vector.broadcast %cst_33 : f32 to vector<8x128xf32>
    %123 = arith.mulf %122, %97 : vector<8x128xf32>
    %124 = arith.subf %80, %123 : vector<8x128xf32>
    %cst_34 = arith.constant 1.15470052 : f32
    %125 = vector.broadcast %cst_34 : f32 to vector<8x128xf32>
    %126 = arith.mulf %125, %100 : vector<8x128xf32>
    %127 = arith.subf %83, %126 : vector<8x128xf32>
    %c0_35 = arith.constant 0 : index
    %128 = arith.index_cast %1 : i32 to index
    %c0_36 = arith.constant 0 : index
    %129 = vector.load %arg2[%c0_35, %128, %c0_36] : memref<9x8x128xf32, #tpu.memory_space<vmem>>, vector<1x8x128xf32>
    %130 = vector.shape_cast %129 : vector<1x8x128xf32> to vector<8x128xf32>
    %131 = vector.shape_cast %103 : vector<8x128xf32> to vector<1x8x128xf32>
    tpu.vector_store %arg2[%c0_35, %128, %c0_36], %131 {strides = array<i32>} : memref<9x8x128xf32, #tpu.memory_space<vmem>>, vector<1x8x128xf32>,
    %c1_37 = arith.constant 1 : index
    %132 = arith.index_cast %1 : i32 to index
    %c0_38 = arith.constant 0 : index
    %133 = vector.load %arg2[%c1_37, %132, %c0_38] : memref<9x8x128xf32, #tpu.memory_space<vmem>>, vector<1x8x128xf32>
    %134 = vector.shape_cast %133 : vector<1x8x128xf32> to vector<8x128xf32>
    %135 = vector.shape_cast %106 : vector<8x128xf32> to vector<1x8x128xf32>
    tpu.vector_store %arg2[%c1_37, %132, %c0_38], %135 {strides = array<i32>} : memref<9x8x128xf32, #tpu.memory_space<vmem>>, vector<1x8x128xf32>,
    %c2_39 = arith.constant 2 : index
    %136 = arith.index_cast %1 : i32 to index
    %c0_40 = arith.constant 0 : index
    %137 = vector.load %arg2[%c2_39, %136, %c0_40] : memref<9x8x128xf32, #tpu.memory_space<vmem>>, vector<1x8x128xf32>
    %138 = vector.shape_cast %137 : vector<1x8x128xf32> to vector<8x128xf32>
    %139 = vector.shape_cast %109 : vector<8x128xf32> to vector<1x8x128xf32>
    tpu.vector_store %arg2[%c2_39, %136, %c0_40], %139 {strides = array<i32>} : memref<9x8x128xf32, #tpu.memory_space<vmem>>, vector<1x8x128xf32>,
    %c3 = arith.constant 3 : index
    %140 = arith.index_cast %1 : i32 to index
    %c0_41 = arith.constant 0 : index
    %141 = vector.load %arg2[%c3, %140, %c0_41] : memref<9x8x128xf32, #tpu.memory_space<vmem>>, vector<1x8x128xf32>
    %142 = vector.shape_cast %141 : vector<1x8x128xf32> to vector<8x128xf32>
    %143 = vector.shape_cast %112 : vector<8x128xf32> to vector<1x8x128xf32>
    tpu.vector_store %arg2[%c3, %140, %c0_41], %143 {strides = array<i32>} : memref<9x8x128xf32, #tpu.memory_space<vmem>>, vector<1x8x128xf32>,
    %c4_42 = arith.constant 4 : index
    %144 = arith.index_cast %1 : i32 to index
    %c0_43 = arith.constant 0 : index
    %145 = vector.load %arg2[%c4_42, %144, %c0_43] : memref<9x8x128xf32, #tpu.memory_space<vmem>>, vector<1x8x128xf32>
    %146 = vector.shape_cast %145 : vector<1x8x128xf32> to vector<8x128xf32>
    %147 = vector.shape_cast %115 : vector<8x128xf32> to vector<1x8x128xf32>
    tpu.vector_store %arg2[%c4_42, %144, %c0_43], %147 {strides = array<i32>} : memref<9x8x128xf32, #tpu.memory_space<vmem>>, vector<1x8x128xf32>,
    %c5 = arith.constant 5 : index
    %148 = arith.index_cast %1 : i32 to index
    %c0_44 = arith.constant 0 : index
    %149 = vector.load %arg2[%c5, %148, %c0_44] : memref<9x8x128xf32, #tpu.memory_space<vmem>>, vector<1x8x128xf32>
    %150 = vector.shape_cast %149 : vector<1x8x128xf32> to vector<8x128xf32>
    %151 = vector.shape_cast %118 : vector<8x128xf32> to vector<1x8x128xf32>
    tpu.vector_store %arg2[%c5, %148, %c0_44], %151 {strides = array<i32>} : memref<9x8x128xf32, #tpu.memory_space<vmem>>, vector<1x8x128xf32>,
    %c6 = arith.constant 6 : index
    %152 = arith.index_cast %1 : i32 to index
    %c0_45 = arith.constant 0 : index
    %153 = vector.load %arg2[%c6, %152, %c0_45] : memref<9x8x128xf32, #tpu.memory_space<vmem>>, vector<1x8x128xf32>
    %154 = vector.shape_cast %153 : vector<1x8x128xf32> to vector<8x128xf32>
    %155 = vector.shape_cast %121 : vector<8x128xf32> to vector<1x8x128xf32>
    tpu.vector_store %arg2[%c6, %152, %c0_45], %155 {strides = array<i32>} : memref<9x8x128xf32, #tpu.memory_space<vmem>>, vector<1x8x128xf32>,
    %c7 = arith.constant 7 : index
    %156 = arith.index_cast %1 : i32 to index
    %c0_46 = arith.constant 0 : index
    %157 = vector.load %arg2[%c7, %156, %c0_46] : memref<9x8x128xf32, #tpu.memory_space<vmem>>, vector<1x8x128xf32>
    %158 = vector.shape_cast %157 : vector<1x8x128xf32> to vector<8x128xf32>
    %159 = vector.shape_cast %124 : vector<8x128xf32> to vector<1x8x128xf32>
    tpu.vector_store %arg2[%c7, %156, %c0_46], %159 {strides = array<i32>} : memref<9x8x128xf32, #tpu.memory_space<vmem>>, vector<1x8x128xf32>,
    %c8 = arith.constant 8 : index
    %160 = arith.index_cast %1 : i32 to index
    %c0_47 = arith.constant 0 : index
    %161 = vector.load %arg2[%c8, %160, %c0_47] : memref<9x8x128xf32, #tpu.memory_space<vmem>>, vector<1x8x128xf32>
    %162 = vector.shape_cast %161 : vector<1x8x128xf32> to vector<8x128xf32>
    %163 = vector.shape_cast %127 : vector<8x128xf32> to vector<1x8x128xf32>
    tpu.vector_store %arg2[%c8, %160, %c0_47], %163 {strides = array<i32>} : memref<9x8x128xf32, #tpu.memory_space<vmem>>, vector<1x8x128xf32>,
    %164 = arith.mulf %103, %4 : vector<8x128xf32>
    %165 = arith.mulf %106, %7 : vector<8x128xf32>
    %166 = arith.addf %164, %165 : vector<8x128xf32>
    %167 = arith.mulf %109, %10 : vector<8x128xf32>
    %168 = arith.addf %166, %167 : vector<8x128xf32>
    %169 = arith.mulf %112, %4 : vector<8x128xf32>
    %170 = arith.mulf %115, %7 : vector<8x128xf32>
    %171 = arith.addf %169, %170 : vector<8x128xf32>
    %172 = arith.mulf %118, %10 : vector<8x128xf32>
    %173 = arith.addf %171, %172 : vector<8x128xf32>
    %174 = arith.mulf %121, %4 : vector<8x128xf32>
    %175 = arith.mulf %124, %7 : vector<8x128xf32>
    %176 = arith.addf %174, %175 : vector<8x128xf32>
    %177 = arith.mulf %127, %10 : vector<8x128xf32>
    %178 = arith.addf %176, %177 : vector<8x128xf32>
    %cst_48 = arith.constant -0.333333343 : f32
    %179 = vector.broadcast %cst_48 : f32 to vector<8x128xf32>
    %180 = arith.mulf %179, %168 : vector<8x128xf32>
    %cst_49 = arith.constant 0.666666686 : f32
    %181 = vector.broadcast %cst_49 : f32 to vector<8x128xf32>
    %182 = arith.mulf %181, %173 : vector<8x128xf32>
    %183 = arith.addf %180, %182 : vector<8x128xf32>
    %cst_50 = arith.constant 0.666666686 : f32
    %184 = vector.broadcast %cst_50 : f32 to vector<8x128xf32>
    %185 = arith.mulf %184, %178 : vector<8x128xf32>
    %186 = arith.addf %183, %185 : vector<8x128xf32>
    %cst_51 = arith.constant -0.666666686 : f32
    %187 = vector.broadcast %cst_51 : f32 to vector<8x128xf32>
    %188 = arith.mulf %187, %168 : vector<8x128xf32>
    %cst_52 = arith.constant 0.333333343 : f32
    %189 = vector.broadcast %cst_52 : f32 to vector<8x128xf32>
    %190 = arith.mulf %189, %173 : vector<8x128xf32>
    %191 = arith.addf %188, %190 : vector<8x128xf32>
    %cst_53 = arith.constant -0.666666686 : f32
    %192 = vector.broadcast %cst_53 : f32 to vector<8x128xf32>
    %193 = arith.mulf %192, %178 : vector<8x128xf32>
    %194 = arith.addf %191, %193 : vector<8x128xf32>
    %cst_54 = arith.constant -0.666666686 : f32
    %195 = vector.broadcast %cst_54 : f32 to vector<8x128xf32>
    %196 = arith.mulf %195, %168 : vector<8x128xf32>
    %cst_55 = arith.constant -0.666666686 : f32
    %197 = vector.broadcast %cst_55 : f32 to vector<8x128xf32>
    %198 = arith.mulf %197, %173 : vector<8x128xf32>
    %199 = arith.addf %196, %198 : vector<8x128xf32>
    %cst_56 = arith.constant 0.333333343 : f32
    %200 = vector.broadcast %cst_56 : f32 to vector<8x128xf32>
    %201 = arith.mulf %200, %178 : vector<8x128xf32>
    %202 = arith.addf %199, %201 : vector<8x128xf32>
    %203 = arith.mulf %103, %186 : vector<8x128xf32>
    %204 = arith.mulf %112, %194 : vector<8x128xf32>
    %205 = arith.addf %203, %204 : vector<8x128xf32>
    %206 = arith.mulf %121, %202 : vector<8x128xf32>
    %207 = arith.addf %205, %206 : vector<8x128xf32>
    %c0_57 = arith.constant 0 : index
    %208 = arith.index_cast %1 : i32 to index
    %c0_58 = arith.constant 0 : index
    %209 = vector.load %arg3[%c0_57, %208, %c0_58] : memref<9x8x128xf32, #tpu.memory_space<vmem>>, vector<1x8x128xf32>
    %210 = vector.shape_cast %209 : vector<1x8x128xf32> to vector<8x128xf32>
    %211 = vector.shape_cast %207 : vector<8x128xf32> to vector<1x8x128xf32>
    tpu.vector_store %arg3[%c0_57, %208, %c0_58], %211 {strides = array<i32>} : memref<9x8x128xf32, #tpu.memory_space<vmem>>, vector<1x8x128xf32>,
    %212 = arith.mulf %106, %186 : vector<8x128xf32>
    %213 = arith.mulf %115, %194 : vector<8x128xf32>
    %214 = arith.addf %212, %213 : vector<8x128xf32>
    %215 = arith.mulf %124, %202 : vector<8x128xf32>
    %216 = arith.addf %214, %215 : vector<8x128xf32>
    %c1_59 = arith.constant 1 : index
    %217 = arith.index_cast %1 : i32 to index
    %c0_60 = arith.constant 0 : index
    %218 = vector.load %arg3[%c1_59, %217, %c0_60] : memref<9x8x128xf32, #tpu.memory_space<vmem>>, vector<1x8x128xf32>
    %219 = vector.shape_cast %218 : vector<1x8x128xf32> to vector<8x128xf32>
    %220 = vector.shape_cast %216 : vector<8x128xf32> to vector<1x8x128xf32>
    tpu.vector_store %arg3[%c1_59, %217, %c0_60], %220 {strides = array<i32>} : memref<9x8x128xf32, #tpu.memory_space<vmem>>, vector<1x8x128xf32>,
    %221 = arith.mulf %109, %186 : vector<8x128xf32>
    %222 = arith.mulf %118, %194 : vector<8x128xf32>
    %223 = arith.addf %221, %222 : vector<8x128xf32>
    %224 = arith.mulf %127, %202 : vector<8x128xf32>
    %225 = arith.addf %223, %224 : vector<8x128xf32>
    %c2_61 = arith.constant 2 : index
    %226 = arith.index_cast %1 : i32 to index
    %c0_62 = arith.constant 0 : index
    %227 = vector.load %arg3[%c2_61, %226, %c0_62] : memref<9x8x128xf32, #tpu.memory_space<vmem>>, vector<1x8x128xf32>
    %228 = vector.shape_cast %227 : vector<1x8x128xf32> to vector<8x128xf32>
    %229 = vector.shape_cast %225 : vector<8x128xf32> to vector<1x8x128xf32>
    tpu.vector_store %arg3[%c2_61, %226, %c0_62], %229 {strides = array<i32>} : memref<9x8x128xf32, #tpu.memory_space<vmem>>, vector<1x8x128xf32>,
    %cst_63 = arith.constant 0.333333343 : f32
    %230 = vector.broadcast %cst_63 : f32 to vector<8x128xf32>
    %231 = arith.mulf %230, %168 : vector<8x128xf32>
    %cst_64 = arith.constant -0.666666686 : f32
    %232 = vector.broadcast %cst_64 : f32 to vector<8x128xf32>
    %233 = arith.mulf %232, %173 : vector<8x128xf32>
    %234 = arith.addf %231, %233 : vector<8x128xf32>
    %cst_65 = arith.constant -0.666666686 : f32
    %235 = vector.broadcast %cst_65 : f32 to vector<8x128xf32>
    %236 = arith.mulf %235, %178 : vector<8x128xf32>
    %237 = arith.addf %234, %236 : vector<8x128xf32>
    %cst_66 = arith.constant 0.666666686 : f32
    %238 = vector.broadcast %cst_66 : f32 to vector<8x128xf32>
    %239 = arith.mulf %238, %168 : vector<8x128xf32>
    %cst_67 = arith.constant -0.333333343 : f32
    %240 = vector.broadcast %cst_67 : f32 to vector<8x128xf32>
    %241 = arith.mulf %240, %173 : vector<8x128xf32>
    %242 = arith.addf %239, %241 : vector<8x128xf32>
    %cst_68 = arith.constant 0.666666686 : f32
    %243 = vector.broadcast %cst_68 : f32 to vector<8x128xf32>
    %244 = arith.mulf %243, %178 : vector<8x128xf32>
    %245 = arith.addf %242, %244 : vector<8x128xf32>
    %cst_69 = arith.constant -0.666666686 : f32
    %246 = vector.broadcast %cst_69 : f32 to vector<8x128xf32>
    %247 = arith.mulf %246, %168 : vector<8x128xf32>
    %cst_70 = arith.constant -0.666666686 : f32
    %248 = vector.broadcast %cst_70 : f32 to vector<8x128xf32>
    %249 = arith.mulf %248, %173 : vector<8x128xf32>
    %250 = arith.addf %247, %249 : vector<8x128xf32>
    %cst_71 = arith.constant 0.333333343 : f32
    %251 = vector.broadcast %cst_71 : f32 to vector<8x128xf32>
    %252 = arith.mulf %251, %178 : vector<8x128xf32>
    %253 = arith.addf %250, %252 : vector<8x128xf32>
    %254 = arith.mulf %103, %237 : vector<8x128xf32>
    %255 = arith.mulf %112, %245 : vector<8x128xf32>
    %256 = arith.addf %254, %255 : vector<8x128xf32>
    %257 = arith.mulf %121, %253 : vector<8x128xf32>
    %258 = arith.addf %256, %257 : vector<8x128xf32>
    %c3_72 = arith.constant 3 : index
    %259 = arith.index_cast %1 : i32 to index
    %c0_73 = arith.constant 0 : index
    %260 = vector.load %arg3[%c3_72, %259, %c0_73] : memref<9x8x128xf32, #tpu.memory_space<vmem>>, vector<1x8x128xf32>
    %261 = vector.shape_cast %260 : vector<1x8x128xf32> to vector<8x128xf32>
    %262 = vector.shape_cast %258 : vector<8x128xf32> to vector<1x8x128xf32>
    tpu.vector_store %arg3[%c3_72, %259, %c0_73], %262 {strides = array<i32>} : memref<9x8x128xf32, #tpu.memory_space<vmem>>, vector<1x8x128xf32>,
    %263 = arith.mulf %106, %237 : vector<8x128xf32>
    %264 = arith.mulf %115, %245 : vector<8x128xf32>
    %265 = arith.addf %263, %264 : vector<8x128xf32>
    %266 = arith.mulf %124, %253 : vector<8x128xf32>
    %267 = arith.addf %265, %266 : vector<8x128xf32>
    %c4_74 = arith.constant 4 : index
    %268 = arith.index_cast %1 : i32 to index
    %c0_75 = arith.constant 0 : index
    %269 = vector.load %arg3[%c4_74, %268, %c0_75] : memref<9x8x128xf32, #tpu.memory_space<vmem>>, vector<1x8x128xf32>
    %270 = vector.shape_cast %269 : vector<1x8x128xf32> to vector<8x128xf32>
    %271 = vector.shape_cast %267 : vector<8x128xf32> to vector<1x8x128xf32>
    tpu.vector_store %arg3[%c4_74, %268, %c0_75], %271 {strides = array<i32>} : memref<9x8x128xf32, #tpu.memory_space<vmem>>, vector<1x8x128xf32>,
    %272 = arith.mulf %109, %237 : vector<8x128xf32>
    %273 = arith.mulf %118, %245 : vector<8x128xf32>
    %274 = arith.addf %272, %273 : vector<8x128xf32>
    %275 = arith.mulf %127, %253 : vector<8x128xf32>
    %276 = arith.addf %274, %275 : vector<8x128xf32>
    %c5_76 = arith.constant 5 : index
    %277 = arith.index_cast %1 : i32 to index
    %c0_77 = arith.constant 0 : index
    %278 = vector.load %arg3[%c5_76, %277, %c0_77] : memref<9x8x128xf32, #tpu.memory_space<vmem>>, vector<1x8x128xf32>
    %279 = vector.shape_cast %278 : vector<1x8x128xf32> to vector<8x128xf32>
    %280 = vector.shape_cast %276 : vector<8x128xf32> to vector<1x8x128xf32>
    tpu.vector_store %arg3[%c5_76, %277, %c0_77], %280 {strides = array<i32>} : memref<9x8x128xf32, #tpu.memory_space<vmem>>, vector<1x8x128xf32>,
    %cst_78 = arith.constant 0.333333343 : f32
    %281 = vector.broadcast %cst_78 : f32 to vector<8x128xf32>
    %282 = arith.mulf %281, %168 : vector<8x128xf32>
    %cst_79 = arith.constant -0.666666686 : f32
    %283 = vector.broadcast %cst_79 : f32 to vector<8x128xf32>
    %284 = arith.mulf %283, %173 : vector<8x128xf32>
    %285 = arith.addf %282, %284 : vector<8x128xf32>
    %cst_80 = arith.constant -0.666666686 : f32
    %286 = vector.broadcast %cst_80 : f32 to vector<8x128xf32>
    %287 = arith.mulf %286, %178 : vector<8x128xf32>
    %288 = arith.addf %285, %287 : vector<8x128xf32>
    %cst_81 = arith.constant -0.666666686 : f32
    %289 = vector.broadcast %cst_81 : f32 to vector<8x128xf32>
    %290 = arith.mulf %289, %168 : vector<8x128xf32>
    %cst_82 = arith.constant 0.333333343 : f32
    %291 = vector.broadcast %cst_82 : f32 to vector<8x128xf32>
    %292 = arith.mulf %291, %173 : vector<8x128xf32>
    %293 = arith.addf %290, %292 : vector<8x128xf32>
    %cst_83 = arith.constant -0.666666686 : f32
    %294 = vector.broadcast %cst_83 : f32 to vector<8x128xf32>
    %295 = arith.mulf %294, %178 : vector<8x128xf32>
    %296 = arith.addf %293, %295 : vector<8x128xf32>
    %cst_84 = arith.constant 0.666666686 : f32
    %297 = vector.broadcast %cst_84 : f32 to vector<8x128xf32>
    %298 = arith.mulf %297, %168 : vector<8x128xf32>
    %cst_85 = arith.constant 0.666666686 : f32
    %299 = vector.broadcast %cst_85 : f32 to vector<8x128xf32>
    %300 = arith.mulf %299, %173 : vector<8x128xf32>
    %301 = arith.addf %298, %300 : vector<8x128xf32>
    %cst_86 = arith.constant -0.333333343 : f32
    %302 = vector.broadcast %cst_86 : f32 to vector<8x128xf32>
    %303 = arith.mulf %302, %178 : vector<8x128xf32>
    %304 = arith.addf %301, %303 : vector<8x128xf32>
    %305 = arith.mulf %103, %288 : vector<8x128xf32>
    %306 = arith.mulf %112, %296 : vector<8x128xf32>
    %307 = arith.addf %305, %306 : vector<8x128xf32>
    %308 = arith.mulf %121, %304 : vector<8x128xf32>
    %309 = arith.addf %307, %308 : vector<8x128xf32>
    %c6_87 = arith.constant 6 : index
    %310 = arith.index_cast %1 : i32 to index
    %c0_88 = arith.constant 0 : index
    %311 = vector.load %arg3[%c6_87, %310, %c0_88] : memref<9x8x128xf32, #tpu.memory_space<vmem>>, vector<1x8x128xf32>
    %312 = vector.shape_cast %311 : vector<1x8x128xf32> to vector<8x128xf32>
    %313 = vector.shape_cast %309 : vector<8x128xf32> to vector<1x8x128xf32>
    tpu.vector_store %arg3[%c6_87, %310, %c0_88], %313 {strides = array<i32>} : memref<9x8x128xf32, #tpu.memory_space<vmem>>, vector<1x8x128xf32>,
    %314 = arith.mulf %106, %288 : vector<8x128xf32>
    %315 = arith.mulf %115, %296 : vector<8x128xf32>
    %316 = arith.addf %314, %315 : vector<8x128xf32>
    %317 = arith.mulf %124, %304 : vector<8x128xf32>
    %318 = arith.addf %316, %317 : vector<8x128xf32>
    %c7_89 = arith.constant 7 : index
    %319 = arith.index_cast %1 : i32 to index
    %c0_90 = arith.constant 0 : index
    %320 = vector.load %arg3[%c7_89, %319, %c0_90] : memref<9x8x128xf32, #tpu.memory_space<vmem>>, vector<1x8x128xf32>
    %321 = vector.shape_cast %320 : vector<1x8x128xf32> to vector<8x128xf32>
    %322 = vector.shape_cast %318 : vector<8x128xf32> to vector<1x8x128xf32>
    tpu.vector_store %arg3[%c7_89, %319, %c0_90], %322 {strides = array<i32>} : memref<9x8x128xf32, #tpu.memory_space<vmem>>, vector<1x8x128xf32>,
    %323 = arith.mulf %109, %288 : vector<8x128xf32>
    %324 = arith.mulf %118, %296 : vector<8x128xf32>
    %325 = arith.addf %323, %324 : vector<8x128xf32>
    %326 = arith.mulf %127, %304 : vector<8x128xf32>
    %327 = arith.addf %325, %326 : vector<8x128xf32>
    %c8_91 = arith.constant 8 : index
    %328 = arith.index_cast %1 : i32 to index
    %c0_92 = arith.constant 0 : index
    %329 = vector.load %arg3[%c8_91, %328, %c0_92] : memref<9x8x128xf32, #tpu.memory_space<vmem>>, vector<1x8x128xf32>
    %330 = vector.shape_cast %329 : vector<1x8x128xf32> to vector<8x128xf32>
    %331 = vector.shape_cast %327 : vector<8x128xf32> to vector<1x8x128xf32>
    tpu.vector_store %arg3[%c8_91, %328, %c0_92], %331 {strides = array<i32>} : memref<9x8x128xf32, #tpu.memory_space<vmem>>, vector<1x8x128xf32>,
    %c1_i32 = arith.constant 1 : i32
    return
  }
  func.func @transform_0(%arg0: i32) -> (i32, i32, i32) {
    %c0_i32 = arith.constant 0 : i32
    %c0_i32_0 = arith.constant 0 : i32
    %c0_i32_1 = arith.constant 0 : i32
    return %c0_i32, %arg0, %c0_i32_0 : i32, i32, i32
  }
  func.func @transform_1(%arg0: i32) -> (i32, i32, i32) {
    %c0_i32 = arith.constant 0 : i32
    %c0_i32_0 = arith.constant 0 : i32
    %c0_i32_1 = arith.constant 0 : i32
    return %c0_i32, %arg0, %c0_i32_0 : i32, i32, i32
  }
  func.func @transform_2(%arg0: i32) -> (i32, i32, i32) {
    %c0_i32 = arith.constant 0 : i32
    %c0_i32_0 = arith.constant 0 : i32
    %c0_i32_1 = arith.constant 0 : i32
    return %c0_i32, %arg0, %c0_i32_0 : i32, i32, i32
  }
}

</mosaic_0001>

<llo_original>
// kernel: filter_bank_constructor_nd.1
$region0: #{filter_bank_constructor_nd.1}
  #allocation0 [shape = 'u32[]', space=smem, size = 0x4, offset = 0x4, fixed_abs, tag = 'smem constant byte address 0x4 - core index']
  #allocation1 [shape = 'u32[144,128]{1,0:T(1,128)}', space=vmem, size = 0x12000, scoped, tag = 'internal scratch']
  %s0 = inlined_call_operand.vmem [shape: f32[5,8,128], index: 0, kind: input, shape index: {}]
  %s1 = inlined_call_operand.vmem [shape: f32[9,8,128], index: 1, kind: output, shape index: {0}]
  %s2 = inlined_call_operand.vmem [shape: f32[9,8,128], index: 2, kind: output, shape index: {1}]
  %3 = xla_tuple %s1, %s2
  %s4 = sld [smem:[#allocation0]]
  $region22: #{filter_bank_constructor_nd.1} parent=0
    _
  %s6 = ssub.s32 1, %s4
  %s7 = scalar_select 0, %s6, %s4
  // Predicated region
  $region2: #{filter_bank_constructor_nd.1} parent=0 // pred_check
    _
  $region3: #{filter_bank_constructor_nd.1} parent=0 // pred_check_branch
    %9 = sbr.rel (0) target = $region5
  $region4: #{filter_bank_constructor_nd.1} parent=0 // pred_region
    _
  $region5: #{filter_bank_constructor_nd.1} parent=0 // pred_fallthru
    _
  %v10 = vld [vmem:[%s0] sm:$0xff]
  %s11 = sadd.s32 0, 8
  %s12 = scalar_lea.vmem %s0, %s11
  %v13 = vld [vmem:[%s12] sm:$0xff]
  %s14 = sadd.s32 0, 16
  %s15 = scalar_lea.vmem %s0, %s14
  %v16 = vld [vmem:[%s15] sm:$0xff]
  %s17 = sadd.s32 0, 32
  %s18 = scalar_lea.vmem %s0, %s17
  %v19 = vld [vmem:[%s18] sm:$0xff]
  %v20 = vadd.f32 %v19, 1e-12
  %v21 = vrcp.pop %v20
  %v22 = vmul.f32 %v10, %v21
  %v23 = vmul.f32 %v13, %v21
  %v24 = vmul.f32 %v16, %v21
  %v25 = vmul.f32 %v22, %v22
  %v26 = vmul.f32 %v23, %v23
  %v27 = vadd.f32 %v25, %v26
  %v28 = vmul.f32 %v24, %v24
  %v29 = vadd.f32 %v27, %v28
  %v30 = vrsqrt.pop %v29
  %v31 = vmul.f32 %v29, 0.5
  %v32 = vmul.f32 %v31, %v30
  %v33 = vmul.f32 %v32, %v30
  %v34 = vsub.f32 1.5, %v33
  %v35 = vmul.f32 %v30, %v34
  %v36 = vmul.f32 %v22, %v35
  %v37 = vmul.f32 %v23, %v35
  %v38 = vmul.f32 %v24, %v35
  %v39 = vadd.f32 %v36, 0.57735026
  %v40 = vadd.f32 %v37, 0.57735026
  %v41 = vadd.f32 %v38, 0.57735026
  %v42 = vmul.f32 %v39, %v39
  %v43 = vmul.f32 %v40, %v40
  %v44 = vadd.f32 %v42, %v43
  %v45 = vmul.f32 %v41, %v41
  %v46 = vadd.f32 %v44, %v45
  %v47 = vrcp.pop %v46
  %v48 = vmul.f32 %v46, %v47
  %v49 = vsub.f32 2.0, %v48
  %v50 = vmul.f32 %v47, %v49
  %v51 = vmul.f32 %v50, -2.0
  %v52 = vmul.f32 %v51, %v39
  %v53 = vmul.f32 %v51, %v40
  %v54 = vmul.f32 %v51, %v41
  %v55 = vmul.f32 %v52, %v39
  %v56 = vadd.f32 %v55, 1.0
  %v57 = vmul.f32 %v52, %v40
  %v58 = vadd.f32 %v57, 0.0
  %v59 = vmul.f32 %v52, %v41
  %v60 = vadd.f32 %v59, 0.0
  %v61 = vmul.f32 %v53, %v39
  %v62 = vadd.f32 %v61, 0.0
  %v63 = vmul.f32 %v53, %v40
  %v64 = vadd.f32 %v63, 1.0
  %v65 = vmul.f32 %v53, %v41
  %v66 = vadd.f32 %v65, 0.0
  %v67 = vmul.f32 %v54, %v39
  %v68 = vadd.f32 %v67, 0.0
  %v69 = vmul.f32 %v54, %v40
  %v70 = vadd.f32 %v69, 0.0
  %v71 = vmul.f32 %v54, %v41
  %v72 = vadd.f32 %v71, 1.0
  %v73 = vmul.f32 %v52, 0.57735026
  %v74 = vmul.f32 %v53, 0.57735026
  %v75 = vadd.f32 %v73, %v74
  %v76 = vmul.f32 %v54, 0.57735026
  %v77 = vadd.f32 %v75, %v76
  %v78 = vmul.f32 %v77, %v39
  %v79 = vadd.f32 %v78, 0.57735026
  %v80 = vmul.f32 %v77, %v40
  %v81 = vadd.f32 %v80, 0.57735026
  %v82 = vmul.f32 %v77, %v41
  %v83 = vadd.f32 %v82, 0.57735026
  %v84 = vmul.f32 %v79, 1.1547005
  %v85 = vsub.f32 %v56, %v84
  %v86 = vmul.f32 %v81, 1.1547005
  %v87 = vsub.f32 %v58, %v86
  %v88 = vmul.f32 %v83, 1.1547005
  %v89 = vsub.f32 %v60, %v88
  %v90 = vsub.f32 %v62, %v84
  %v91 = vsub.f32 %v64, %v86
  %v92 = vsub.f32 %v66, %v88
  %v93 = vsub.f32 %v68, %v84
  %v94 = vsub.f32 %v70, %v86
  %v95 = vsub.f32 %v72, %v88
  %96 = vst [vmem:[%s1] sm:$0xff] %v85
  %s97 = scalar_lea.vmem %s1, %s11
  %98 = vst [vmem:[%s97] sm:$0xff] %v87
  %s99 = scalar_lea.vmem %s1, %s14
  %100 = vst [vmem:[%s99] sm:$0xff] %v89
  %s101 = sadd.s32 0, 24
  %s102 = scalar_lea.vmem %s1, %s101
  %103 = vst [vmem:[%s102] sm:$0xff] %v90
  %s104 = scalar_lea.vmem %s1, %s17
  %105 = vst [vmem:[%s104] sm:$0xff] %v91
  %s106 = sadd.s32 0, 40
  %s107 = scalar_lea.vmem %s1, %s106
  %108 = vst [vmem:[%s107] sm:$0xff] %v92
  %s109 = sadd.s32 0, 48
  %s110 = scalar_lea.vmem %s1, %s109
  %111 = vst [vmem:[%s110] sm:$0xff] %v93
  %s112 = sadd.s32 0, 56
  %s113 = scalar_lea.vmem %s1, %s112
  %114 = vst [vmem:[%s113] sm:$0xff] %v94
  %s115 = sadd.s32 0, 64
  %s116 = scalar_lea.vmem %s1, %s115
  %117 = vst [vmem:[%s116] sm:$0xff] %v95
  %v118 = vmul.f32 %v85, %v10
  %v119 = vmul.f32 %v87, %v13
  %v120 = vadd.f32 %v118, %v119
  %v121 = vmul.f32 %v89, %v16
  %v122 = vadd.f32 %v120, %v121
  %v123 = vmul.f32 %v90, %v10
  %v124 = vmul.f32 %v91, %v13
  %v125 = vadd.f32 %v123, %v124
  %v126 = vmul.f32 %v92, %v16
  %v127 = vadd.f32 %v125, %v126
  %v128 = vmul.f32 %v93, %v10
  %v129 = vmul.f32 %v94, %v13
  %v130 = vadd.f32 %v128, %v129
  %v131 = vmul.f32 %v95, %v16
  %v132 = vadd.f32 %v130, %v131
  %v133 = vmul.f32 %v122, -0.33333334
  %v134 = vmul.f32 %v127, 0.6666667
  %v135 = vadd.f32 %v133, %v134
  %v136 = vmul.f32 %v132, 0.6666667
  %v137 = vadd.f32 %v135, %v136
  %v138 = vmul.f32 %v122, -0.6666667
  %v139 = vmul.f32 %v127, 0.33333334
  %v140 = vadd.f32 %v138, %v139
  %v141 = vmul.f32 %v132, -0.6666667
  %v142 = vadd.f32 %v140, %v141
  %v143 = vmul.f32 %v127, -0.6666667
  %v144 = vadd.f32 %v138, %v143
  %v145 = vmul.f32 %v132, 0.33333334
  %v146 = vadd.f32 %v144, %v145
  %v147 = vmul.f32 %v85, %v137
  %v148 = vmul.f32 %v90, %v142
  %v149 = vadd.f32 %v147, %v148
  %v150 = vmul.f32 %v93, %v146
  %v151 = vadd.f32 %v149, %v150
  %152 = vst [vmem:[%s2] sm:$0xff] %v151
  %v153 = vmul.f32 %v87, %v137
  %v154 = vmul.f32 %v91, %v142
  %v155 = vadd.f32 %v153, %v154
  %v156 = vmul.f32 %v94, %v146
  %v157 = vadd.f32 %v155, %v156
  %s158 = scalar_lea.vmem %s2, %s11
  %159 = vst [vmem:[%s158] sm:$0xff] %v157
  %v160 = vmul.f32 %v89, %v137
  %v161 = vmul.f32 %v92, %v142
  %v162 = vadd.f32 %v160, %v161
  %v163 = vmul.f32 %v95, %v146
  %v164 = vadd.f32 %v162, %v163
  %s165 = scalar_lea.vmem %s2, %s14
  %166 = vst [vmem:[%s165] sm:$0xff] %v164
  %v167 = vmul.f32 %v122, 0.33333334
  %v168 = vadd.f32 %v167, %v143
  %v169 = vadd.f32 %v168, %v141
  %v170 = vmul.f32 %v122, 0.6666667
  %v171 = vmul.f32 %v127, -0.33333334
  %v172 = vadd.f32 %v170, %v171
  %v173 = vadd.f32 %v172, %v136
  %v174 = vmul.f32 %v85, %v169
  %v175 = vmul.f32 %v90, %v173
  %v176 = vadd.f32 %v174, %v175
  %v177 = vadd.f32 %v176, %v150
  %s178 = scalar_lea.vmem %s2, %s101
  %179 = vst [vmem:[%s178] sm:$0xff] %v177
  %v180 = vmul.f32 %v87, %v169
  %v181 = vmul.f32 %v91, %v173
  %v182 = vadd.f32 %v180, %v181
  %v183 = vadd.f32 %v182, %v156
  %s184 = scalar_lea.vmem %s2, %s17
  %185 = vst [vmem:[%s184] sm:$0xff] %v183
  %v186 = vmul.f32 %v89, %v169
  %v187 = vmul.f32 %v92, %v173
  %v188 = vadd.f32 %v186, %v187
  %v189 = vadd.f32 %v188, %v163
  %s190 = scalar_lea.vmem %s2, %s106
  %191 = vst [vmem:[%s190] sm:$0xff] %v189
  %v192 = vadd.f32 %v170, %v134
  %v193 = vmul.f32 %v132, -0.33333334
  %v194 = vadd.f32 %v192, %v193
  %v195 = vadd.f32 %v174, %v148
  %v196 = vmul.f32 %v93, %v194
  %v197 = vadd.f32 %v195, %v196
  %s198 = scalar_lea.vmem %s2, %s109
  %199 = vst [vmem:[%s198] sm:$0xff] %v197
  %v200 = vadd.f32 %v180, %v154
  %v201 = vmul.f32 %v94, %v194
  %v202 = vadd.f32 %v200, %v201
  %s203 = scalar_lea.vmem %s2, %s112
  %204 = vst [vmem:[%s203] sm:$0xff] %v202
  %v205 = vadd.f32 %v186, %v161
  %v206 = vmul.f32 %v95, %v194
  %v207 = vadd.f32 %v205, %v206
  %s208 = scalar_lea.vmem %s2, %s115
  %209 = vst [vmem:[%s208] sm:$0xff] %v207
  // Predicated region
  $region6: #{filter_bank_constructor_nd.1} parent=0 // pred_check
    _
  $region7: #{filter_bank_constructor_nd.1} parent=0 // pred_check_branch
    %211 = sbr.rel (0) target = $region9
  $region8: #{filter_bank_constructor_nd.1} parent=0 // pred_region
    _
  $region9: #{filter_bank_constructor_nd.1} parent=0 // pred_fallthru
    _
  // Predicated region
  $region10: #{filter_bank_constructor_nd.1} parent=0 // pred_check
    _
  $region11: #{filter_bank_constructor_nd.1} parent=0 // pred_check_branch
    %213 = sbr.rel (0) target = $region13
  $region12: #{filter_bank_constructor_nd.1} parent=0 // pred_region
    _
  $region13: #{filter_bank_constructor_nd.1} parent=0 // pred_fallthru
    _
  // Predicated region
  $region14: #{filter_bank_constructor_nd.1} parent=0 // pred_check
    _
  $region15: #{filter_bank_constructor_nd.1} parent=0 // pred_check_branch
    %215 = sbr.rel (0) target = $region17
  $region16: #{filter_bank_constructor_nd.1} parent=0 // pred_region
    _
  $region17: #{filter_bank_constructor_nd.1} parent=0 // pred_fallthru
    _
  // Predicated region
  $region18: #{filter_bank_constructor_nd.1} parent=0 // pred_check
    _
  $region19: #{filter_bank_constructor_nd.1} parent=0 // pred_check_branch
    %217 = sbr.rel (0) target = $region21
  $region20: #{filter_bank_constructor_nd.1} parent=0 // pred_region
    _
  $region21: #{filter_bank_constructor_nd.1} parent=0 // pred_fallthru
    _

</llo_original>
